<compile_context>
chip_gen: v5e
topology: v5e:2x2
jax: 0.10.0
libtpu: 0.0.40
codegen_flags: <defaults>
</compile_context>

<pallas_src>
import numpy as np

import jax
import jax.numpy as jnp
from jax.experimental import pallas as pl
from jax.experimental.pallas import tpu as pltpu


def _round_up(x, m):
    return (x + m - 1) // m * m


# ----------------------------------------------------------------------------
# Fused Pallas kernel: one grid step == Lb layers, no reshapes in the body.
#   x_ref: (Lb, B*K_max, D)  f32
#   w_ref: (Lb, D, O_pad)    bf16 (upcast in-kernel)
#   b_ref: (Lb, 1, O_pad)    f32
#   o_ref: (Lb, B*K_max, O_pad)
# ----------------------------------------------------------------------------
def _debedder_kernel(x_ref, w_ref, b_ref, o_ref):
    lb = x_ref.shape[0]
    for i in range(lb):  # static unroll; Lb is small (<= 8)
        x = x_ref[i].astype(jnp.float32)
        w = w_ref[i].astype(jnp.float32)   # bf16 -> f32 (weights stream as bf16)
        acc = jnp.dot(x, w, preferred_element_type=jnp.float32)   # MXU, f32 acc
        acc = acc + b_ref[i]                                       # (BK,O)+(1,O)
        o_ref[i] = acc.astype(o_ref.dtype)


# ----------------------------------------------------------------------------
# Module-equivalent wrapper
# ----------------------------------------------------------------------------
class DebedderNeuronGroupIndexPallas:
    def __init__(self, index_dict, d_model, seed=22, max_batch_hint=8):
        self.index_dict = index_dict
        self.d_model = d_model
        d = index_dict
        self.num_layers = len(d["layer"])
        self.kernel_no = [int(k) for k in d["kernel_no"]]
        self.ks_cin = [int(d["kernel_size"][i]) * int(d["channels_in"][i])
                       for i in range(self.num_layers)]
        self.i_dims = [c + 1 for c in self.ks_cin]
        self.idx_start = [int(s) for s in d["idx_start"]]
        self.K_max = max(self.kernel_no)
        self.O_pad = _round_up(max(self.i_dims), 128)
        self.uniform_k = all(k == self.kernel_no[0] for k in self.kernel_no)

        # Deterministic parameter init (synthetic, nn.Linear-style uniform).
        # Weights are rounded to bf16 once (that is what the kernel streams).
        key = jax.random.PRNGKey(seed)
        bound = 1.0 / float(np.sqrt(d_model))
        self.weights, self.biases = [], []
        for idx in range(self.num_layers):
            key, kw, kb = jax.random.split(key, 3)
            w = jax.random.uniform(kw, (d_model, self.i_dims[idx]),
                                   jnp.float32, -bound, bound)
            w = w.astype(jnp.bfloat16).astype(jnp.float32)
            b = jax.random.uniform(kb, (self.i_dims[idx],),
                                   jnp.float32, -bound, bound)
            self.weights.append(w)
            self.biases.append(b)

        self._get_kernel_slices()
        self.i_dim_total = self.slice_lst[-1][-1][-1] + 1

        self.Lb = self._choose_layers_per_step(max_batch_hint)
        self.L_pad = _round_up(self.num_layers, self.Lb)

        self._build_packed_params()
        self._build_index_plan()

    # Same bookkeeping as the PyTorch module.
    def _get_kernel_slices(self):
        slice_lst = []
        d = self.index_dict
        for idx, _layer in enumerate(d["layer"]):
            kernel_slice_lst = []
            for kernel_dx in range(d["kernel_no"][idx]):
                ks_cin = d["kernel_size"][idx] * d["channels_in"][idx]
                kernel_start = d["idx_start"][idx] + kernel_dx * ks_cin
                kernel_end = kernel_start + ks_cin
                bias = d["idx_start"][idx] + d["kernel_no"][idx] * ks_cin + kernel_dx
                index_kernel = list(range(kernel_start, kernel_end))
                index_kernel.append(bias)
                kernel_slice_lst.append(index_kernel)
            slice_lst.append(kernel_slice_lst)
        self.slice_lst = slice_lst

    def __len__(self):
        return sum(len(s) for s in self.slice_lst)

    # How many layers per grid step fit a conservative double-buffered VMEM budget.
    def _choose_layers_per_step(self, batch_hint):
        bk = max(1, batch_hint) * self.K_max
        per_layer = (bk * self.d_model * 4          # x block (f32)
                     + self.d_model * self.O_pad * 2  # weight block (bf16)
                     + self.O_pad * 4                 # bias block (f32)
                     + bk * self.O_pad * 4)           # output block (f32)
        budget = 20 << 20                             # safe across v5e/v6e/v7x
        lb = max(1, budget // (2 * per_layer))
        return int(min(lb, self.num_layers, 8))

    # Zero-pad + stack parameters once (lane-dense O_pad, bf16 weight stream).
    def _build_packed_params(self):
        Lp, D, O = self.L_pad, self.d_model, self.O_pad
        W = np.zeros((Lp, D, O), np.float32)
        Bv = np.zeros((Lp, 1, O), np.float32)
        for l in range(self.num_layers):
            W[l, :, :self.i_dims[l]] = np.asarray(self.weights[l])
            Bv[l, 0, :self.i_dims[l]] = np.asarray(self.biases[l])
        self.W_stack = jnp.asarray(W, dtype=jnp.bfloat16)   # (L_pad, D, O_pad)
        self.b_stack = jnp.asarray(Bv, dtype=jnp.float32)   # (L_pad, 1, O_pad)

    # Static index plan: token feeding each (layer, kernel) slot, plus whether the
    # flat-output layout is contiguous (=> concat path) or needs slice-scatter.
    def _build_index_plan(self):
        L, Lp, Km = self.num_layers, self.L_pad, self.K_max
        tok = np.zeros((Lp, Km), np.int32)
        off = 0
        for l in range(L):
            K = self.kernel_no[l]
            for k in range(Km):
                tok[l, k] = off + min(k, K - 1)   # clamp padded slots in-bounds
            off += K
        self.total_kernels = off
        self.tok_idx = jnp.asarray(tok.reshape(-1))   # (L_pad*K_max,)

        expected = 0
        contig = True
        for l in range(L):
            if self.idx_start[l] != expected:
                contig = False
            expected += self.kernel_no[l] * (self.ks_cin[l] + 1)
        self.contiguous_layout = contig and (expected == self.i_dim_total)

    def __call__(self, x):
        """x: (B, num_tokens, d_model) -> y: (B, i_dim_total)."""
        B, T, D = x.shape
        L, Lp, Km, O, Lb = self.num_layers, self.L_pad, self.K_max, self.O_pad, self.Lb
        BK = B * Km

        # ---- build (L_pad, B*K_max, D) activation slab ------------------------
        if self.uniform_k and T == L * Km:
            x_t = x.reshape(B, L, Km, D)                         # no gather
        else:
            x_t = jnp.take(x, self.tok_idx, axis=1).reshape(B, Lp, Km, D)
        x_t = jnp.transpose(x_t, (1, 0, 2, 3)).reshape(-1, BK, D)
        if x_t.shape[0] < Lp:
            pad = jnp.zeros((Lp - x_t.shape[0], BK, D), x.dtype)
            x_t = jnp.concatenate([x_t, pad], axis=0)

        # ---- VMEM limit + cost estimate ---------------------------------------
        per_step = 2 * Lb * (BK * D * 4 + D * O * 2 + O * 4 + BK * O * 4)
        vmem_limit = int(min(max(per_step + (2 << 20), 8 << 20), 48 << 20))
        cost = pl.CostEstimate(
            flops=2 * Lp * BK * D * O,
            transcendentals=0,
            bytes_accessed=int(x_t.size * 4 + self.W_stack.size * 2
                               + self.b_stack.size * 4 + Lp * BK * O * 4),
        )

        # ---- fused matmul over all layers -------------------------------------
        slab = pl.pallas_call(
            _debedder_kernel,
            out_shape=jax.ShapeDtypeStruct((Lp, BK, O), x.dtype),
            grid=(Lp // Lb,),
            in_specs=[
                pl.BlockSpec((Lb, BK, D), lambda l: (l, 0, 0)),
                pl.BlockSpec((Lb, D, O), lambda l: (l, 0, 0)),
                pl.BlockSpec((Lb, 1, O), lambda l: (l, 0, 0)),
            ],
            out_specs=pl.BlockSpec((Lb, BK, O), lambda l: (l, 0, 0)),
            compiler_params=pltpu.CompilerParams(
                dimension_semantics=("parallel",),
                vmem_limit_bytes=vmem_limit),
            cost_estimate=cost,
        )(x_t, self.W_stack, self.b_stack)

        # ---- static slices -> flat y (replaces the per-kernel scatter) --------
        slab = slab.reshape(Lp, B, Km, O)
        segs = []
        for l in range(L):
            K, c, s = self.kernel_no[l], self.ks_cin[l], self.idx_start[l]
            w_part = slab[l, :, :K, :c].reshape(B, K * c)   # weight cols, y order
            b_part = slab[l, :, :K, c]                      # bias cols
            segs.append((s, w_part))
            segs.append((s + K * c, b_part))

        if self.contiguous_layout:
            y = jnp.concatenate([seg for _, seg in segs], axis=1)
        else:
            y = jnp.zeros((B, self.i_dim_total), slab.dtype)
            for start, seg in segs:
                y = y.at[:, start:start + seg.shape[1]].set(seg)
        return y


# ----------------------------------------------------------------------------
# Pure-JAX reference mirroring the PyTorch forward exactly (loop + fancy index)
# ----------------------------------------------------------------------------
def reference_forward(module, x):
    B = x.shape[0]
    i_dim_total = module.slice_lst[-1][-1][-1] + 1
    y = jnp.zeros((B, i_dim_total), dtype=x.dtype)
    embed_dx = 0
    for idx, kernel_slice_lst in enumerate(module.slice_lst):
        for kernel_index in kernel_slice_lst:
            y_tmp = x[:, embed_dx] @ module.weights[idx] + module.biases[idx]
            y = y.at[:, jnp.array(kernel_index)].set(y_tmp)
            embed_dx += 1
    return y


if __name__ == "__main__":
    configs = [
        # uniform kernel counts -> reshape fast path (no token gather)
        {"index_dict": {"layer": [0, 1], "kernel_size": [9, 9],
                        "channels_in": [1, 4], "kernel_no": [4, 4],
                        "idx_start": [0, 40]},
         "d_model": 32},
        # ragged kernel counts -> gather path with padded kernel slots
        {"index_dict": {"layer": [0, 1], "kernel_size": [5, 3],
                        "channels_in": [2, 3], "kernel_no": [4, 6],
                        "idx_start": [0, 44]},
         "d_model": 32},
    ]

    batch = 2
    key = jax.random.PRNGKey(0)
    for cfg in configs:
        idd = cfg["index_dict"]
        num_tokens = sum(idd["kernel_no"])
        module = DebedderNeuronGroupIndexPallas(idd, cfg["d_model"], seed=22)

        key, kx = jax.random.split(key)
        x = jax.random.normal(kx, (batch, num_tokens, cfg["d_model"]),
                              dtype=jnp.float32)

        y = jax.block_until_ready(jax.jit(module.__call__)(x))
        y_ref = jax.block_until_ready(reference_forward(module, x))

        assert y.shape == y_ref.shape, (y.shape, y_ref.shape)
        assert jnp.allclose(y, y_ref, atol=1e-4, rtol=1e-4), "mismatch vs reference"

    print("KERNEL_OK")
</pallas_src>

<mosaic_0001>
module attributes {stable_mosaic.version = 11 : i64} {
  func.func @_debedder_kernel(%arg0: i32, %arg1: memref<2x8x32xf32, #tpu.memory_space<vmem>>, %arg2: memref<2x32x128xbf16, #tpu.memory_space<vmem>>, %arg3: memref<2x1x128xf32, #tpu.memory_space<vmem>>, %arg4: memref<2x8x128xf32, #tpu.memory_space<vmem>>) attributes {dimension_semantics = [#tpu.dimension_semantics<parallel>], iteration_bounds = array<i64: 1>, scalar_prefetch = 0 : i64, scratch_operands = 0 : i64, tpu.core_type = #tpu.core_type<tc>, window_params = [{transform_indices = @transform_0, window_bounds = array<i64: 2, 8, 32>}, {transform_indices = @transform_1, window_bounds = array<i64: 2, 32, 128>}, {transform_indices = @transform_2, window_bounds = array<i64: 2, 1, 128>}, {transform_indices = @transform_3, window_bounds = array<i64: 2, 8, 128>}]} {
    %c0 = arith.constant 0 : index
    %c0_0 = arith.constant 0 : index
    %c0_1 = arith.constant 0 : index
    %0 = vector.load %arg1[%c0, %c0_0, %c0_1] : memref<2x8x32xf32, #tpu.memory_space<vmem>>, vector<1x8x32xf32>
    %1 = vector.shape_cast %0 : vector<1x8x32xf32> to vector<8x32xf32>
    %c0_2 = arith.constant 0 : index
    %c0_3 = arith.constant 0 : index
    %c0_4 = arith.constant 0 : index
    %2 = vector.load %arg2[%c0_2, %c0_3, %c0_4] : memref<2x32x128xbf16, #tpu.memory_space<vmem>>, vector<1x32x128xbf16>
    %3 = vector.shape_cast %2 : vector<1x32x128xbf16> to vector<32x128xbf16>
    %4 = arith.extf %3 : vector<32x128xbf16> to vector<32x128xf32>
    %cst = arith.constant dense<0.000000e+00> : vector<8x128xf32>
    %5 = tpu.matmul %1, %4, %cst {dimension_numbers = #tpu.dot_dimension_numbers<[1], [0], [0], [1], [0, 0, 1, 1], [], []>} : vector<8x32xf32>, vector<32x128xf32>, vector<8x128xf32> -> vector<8x128xf32>
    %c0_5 = arith.constant 0 : index
    %c0_6 = arith.constant 0 : index
    %c0_7 = arith.constant 0 : index
    %6 = vector.load %arg3[%c0_5, %c0_6, %c0_7] : memref<2x1x128xf32, #tpu.memory_space<vmem>>, vector<1x1x128xf32>
    %7 = vector.shape_cast %6 : vector<1x1x128xf32> to vector<1x128xf32>
    %8 = vector.broadcast %7 : vector<1x128xf32> to vector<8x128xf32>
    %9 = arith.addf %5, %8 : vector<8x128xf32>
    %c0_8 = arith.constant 0 : index
    %c0_9 = arith.constant 0 : index
    %c0_10 = arith.constant 0 : index
    %10 = vector.load %arg4[%c0_8, %c0_9, %c0_10] : memref<2x8x128xf32, #tpu.memory_space<vmem>>, vector<1x8x128xf32>
    %11 = vector.shape_cast %10 : vector<1x8x128xf32> to vector<8x128xf32>
    %12 = vector.shape_cast %9 : vector<8x128xf32> to vector<1x8x128xf32>
    tpu.vector_store %arg4[%c0_8, %c0_9, %c0_10], %12 {strides = array<i32>} : memref<2x8x128xf32, #tpu.memory_space<vmem>>, vector<1x8x128xf32>,
    %c1 = arith.constant 1 : index
    %c0_11 = arith.constant 0 : index
    %c0_12 = arith.constant 0 : index
    %13 = vector.load %arg1[%c1, %c0_11, %c0_12] : memref<2x8x32xf32, #tpu.memory_space<vmem>>, vector<1x8x32xf32>
    %14 = vector.shape_cast %13 : vector<1x8x32xf32> to vector<8x32xf32>
    %c1_13 = arith.constant 1 : index
    %c0_14 = arith.constant 0 : index
    %c0_15 = arith.constant 0 : index
    %15 = vector.load %arg2[%c1_13, %c0_14, %c0_15] : memref<2x32x128xbf16, #tpu.memory_space<vmem>>, vector<1x32x128xbf16>
    %16 = vector.shape_cast %15 : vector<1x32x128xbf16> to vector<32x128xbf16>
    %17 = arith.extf %16 : vector<32x128xbf16> to vector<32x128xf32>
    %cst_16 = arith.constant dense<0.000000e+00> : vector<8x128xf32>
    %18 = tpu.matmul %14, %17, %cst_16 {dimension_numbers = #tpu.dot_dimension_numbers<[1], [0], [0], [1], [0, 0, 1, 1], [], []>} : vector<8x32xf32>, vector<32x128xf32>, vector<8x128xf32> -> vector<8x128xf32>
    %c1_17 = arith.constant 1 : index
    %c0_18 = arith.constant 0 : index
    %c0_19 = arith.constant 0 : index
    %19 = vector.load %arg3[%c1_17, %c0_18, %c0_19] : memref<2x1x128xf32, #tpu.memory_space<vmem>>, vector<1x1x128xf32>
    %20 = vector.shape_cast %19 : vector<1x1x128xf32> to vector<1x128xf32>
    %21 = vector.broadcast %20 : vector<1x128xf32> to vector<8x128xf32>
    %22 = arith.addf %18, %21 : vector<8x128xf32>
    %c1_20 = arith.constant 1 : index
    %c0_21 = arith.constant 0 : index
    %c0_22 = arith.constant 0 : index
    %23 = vector.load %arg4[%c1_20, %c0_21, %c0_22] : memref<2x8x128xf32, #tpu.memory_space<vmem>>, vector<1x8x128xf32>
    %24 = vector.shape_cast %23 : vector<1x8x128xf32> to vector<8x128xf32>
    %25 = vector.shape_cast %22 : vector<8x128xf32> to vector<1x8x128xf32>
    tpu.vector_store %arg4[%c1_20, %c0_21, %c0_22], %25 {strides = array<i32>} : memref<2x8x128xf32, #tpu.memory_space<vmem>>, vector<1x8x128xf32>,
    return
  }
  func.func @transform_0(%arg0: i32) -> (i32, i32, i32) {
    %c0_i32 = arith.constant 0 : i32
    %c0_i32_0 = arith.constant 0 : i32
    %c0_i32_1 = arith.constant 0 : i32
    return %arg0, %c0_i32, %c0_i32_0 : i32, i32, i32
  }
  func.func @transform_1(%arg0: i32) -> (i32, i32, i32) {
    %c0_i32 = arith.constant 0 : i32
    %c0_i32_0 = arith.constant 0 : i32
    %c0_i32_1 = arith.constant 0 : i32
    return %arg0, %c0_i32, %c0_i32_0 : i32, i32, i32
  }
  func.func @transform_2(%arg0: i32) -> (i32, i32, i32) {
    %c0_i32 = arith.constant 0 : i32
    %c0_i32_0 = arith.constant 0 : i32
    %c0_i32_1 = arith.constant 0 : i32
    return %arg0, %c0_i32, %c0_i32_0 : i32, i32, i32
  }
  func.func @transform_3(%arg0: i32) -> (i32, i32, i32) {
    %c0_i32 = arith.constant 0 : i32
    %c0_i32_0 = arith.constant 0 : i32
    %c0_i32_1 = arith.constant 0 : i32
    return %arg0, %c0_i32, %c0_i32_0 : i32, i32, i32
  }
}

</mosaic_0001>

<llo_original>
// kernel: squeeze.6
$region0: #{squeeze.6}
  %s0 = inlined_call_operand.vmem [shape: f32[1,2,4,36], index: 0, kind: input, shape index: {}]
  %s1 = inlined_call_operand.vmem [shape: f32[2,144], index: 1, kind: output, shape index: {}]
  $region1: #{squeeze.6} parent=0
    #allocation0 [shape = 'u8[8192]{0}', space=vmem, size = 0x2000, scoped, tag = 'scoped mem for output reshape']
    #allocation1 [shape = 'u8[8192]{0}', space=vmem, size = 0x2000, scoped, tag = 'scoped mem for input reshape']
    %s3 = ssub.s32 16, 1
    %s4 = scalar_lea.vmem %s0, 4
    %v5 = vld [vmem:[%s4] sm:%s3]
    %s6 = scalar_lea.vmem [#allocation1], 8
    %7 = vst [vmem:[%s6] sm:%s3] %v5
    %v8 = vld [vmem:[%s0] sm:%s3]
    %9 = vst [vmem:[#allocation1] sm:%s3] %v8
    %s10 = smov 3
    %v11 = vld [vmem:[#allocation1] ss:$8 sm:%s10]
    %vm12 = vcmask 293888
    %13 = vst.msk [vmem:[#allocation0] sm:$0x3] %vm12, %v11
    %s14 = scalar_lea.vmem [#allocation1], 3
    %s15 = smov 3
    %v16 = vld [vmem:[%s14] ss:$8 sm:%s15]
    %s17 = scalar_lea.vmem [#allocation1], 3
    %s18 = smov 3
    %v19 = vld [vmem:[%s17] ss:$8 sm:%s18]
    %vm20 = vcmask 162816
    %v21 = vsel %vm20, %v19, %v16
    %22 = vrot.lane.b32.xlu0 %v21, 108
    %v23 = vpop.permute.xlu0 %22
    %vm24 = vcmask 130048
    %s25 = scalar_lea.vmem [#allocation0], 8
    %26 = vst.msk [vmem:[%s25] sm:$0x3] %vm24, %v23
    %vm27 = vcmask 1048416
    %28 = vst.msk [vmem:[#allocation0] sm:$0x3] %vm27, %v23
    %s29 = scalar_lea.vmem [#allocation1], 2
    %s30 = smov 3
    %v31 = vld [vmem:[%s29] ss:$8 sm:%s30]
    %32 = vrot.lane.b32.xlu0 %v31, 72
    %v33 = vpop.permute.xlu0 %32
    %vm34 = vcmask 884288
    %35 = vst.msk [vmem:[#allocation0] sm:$0x3] %vm34, %v33
    %s36 = scalar_lea.vmem [#allocation1], 1
    %s37 = smov 3
    %v38 = vld [vmem:[%s36] ss:$8 sm:%s37]
    %39 = vrot.lane.b32.xlu0 %v38, 36
    %v40 = vpop.permute.xlu0 %39
    %vm41 = vcmask 589088
    %42 = vst.msk [vmem:[#allocation0] sm:$0x3] %vm41, %v40
    %s44 = ssub.s32 4, 1
    %v45 = vld [vmem:[#allocation0] sm:%s44]
    %s47 = ssub.s32 4, 1
    %48 = vst [vmem:[%s1] sm:%s47] %v45
    %s49 = scalar_lea.vmem [#allocation0], 8
    %v50 = vld [vmem:[%s49] sm:%s44]
    %s52 = ssub.s32 4, 1
    %s53 = scalar_lea.vmem %s1, 2
    %54 = vst [vmem:[%s53] sm:%s52] %v50

// kernel: squeeze.4
$region0: #{squeeze.4}
  %s0 = inlined_call_operand.vmem [shape: f32[1,2,4,9], index: 0, kind: input, shape index: {}]
  %s1 = inlined_call_operand.vmem [shape: f32[2,36], index: 1, kind: output, shape index: {}]
  $region1: #{squeeze.4} parent=0
    #allocation0 [shape = 'u8[4096]{0}', space=vmem, size = 0x1000, scoped, tag = 'scoped mem for output reshape']
    #allocation1 [shape = 'u8[8192]{0}', space=vmem, size = 0x2000, scoped, tag = 'scoped mem for input reshape']
    %s3 = ssub.s32 16, 1
    %s4 = scalar_lea.vmem %s0, 4
    %v5 = vld [vmem:[%s4] sm:%s3]
    %s6 = scalar_lea.vmem [#allocation1], 8
    %7 = vst [vmem:[%s6] sm:%s3] %v5
    %v8 = vld [vmem:[%s0] sm:%s3]
    %9 = vst [vmem:[#allocation1] sm:%s3] %v8
    %s10 = smov 3
    %v11 = vld [vmem:[#allocation1] ss:$8 sm:%s10]
    %vm12 = vcmask 72704
    %13 = vst.msk [vmem:[#allocation0] sm:$0x3] %vm12, %v11
    %s14 = scalar_lea.vmem [#allocation1], 3
    %s15 = smov 3
    %v16 = vld [vmem:[%s14] ss:$8 sm:%s15]
    %17 = vrot.lane.b32.xlu0 %v16, 27
    %v18 = vpop.permute.xlu0 %17
    %vm19 = vcmask 294104
    %20 = vst.msk [vmem:[#allocation0] sm:$0x3] %vm19, %v18
    %s21 = scalar_lea.vmem [#allocation1], 2
    %s22 = smov 3
    %v23 = vld [vmem:[%s21] ss:$8 sm:%s22]
    %24 = vrot.lane.b32.xlu0 %v23, 18
    %v25 = vpop.permute.xlu0 %24
    %vm26 = vcmask 220304
    %27 = vst.msk [vmem:[#allocation0] sm:$0x3] %vm26, %v25
    %s28 = scalar_lea.vmem [#allocation1], 1
    %s29 = smov 3
    %v30 = vld [vmem:[%s28] ss:$8 sm:%s29]
    %31 = vrot.lane.b32.xlu0 %v30, 9
    %v32 = vpop.permute.xlu0 %31
    %vm33 = vcmask 146504
    %34 = vst.msk [vmem:[#allocation0] sm:$0x3] %vm33, %v32
    %s36 = ssub.s32 4, 1
    %v37 = vld [vmem:[#allocation0] sm:%s36]
    %s39 = ssub.s32 4, 1
    %40 = vst [vmem:[%s1] sm:%s39] %v37

// kernel: a_call__.1
$region0: #{a_call__.1}
  #allocation0 [shape = 'u32[]', space=smem, size = 0x4, offset = 0x4, fixed_abs, tag = 'smem constant byte address 0x4 - core index']
  #allocation1 [shape = 'u32[72,128]{1,0:T(1,128)}', space=vmem, size = 0x9000, scoped, tag = 'internal scratch']
  %s0 = inlined_call_operand.vmem [shape: f32[2,8,32], index: 0, kind: input, shape index: {}]
  %s1 = inlined_call_operand.vmem [shape: bf16[2,32,128], index: 1, kind: input, shape index: {}]
  %s2 = inlined_call_operand.vmem [shape: f32[2,1,128], index: 2, kind: input, shape index: {}]
  %s3 = inlined_call_operand.vmem [shape: f32[2,8,128], index: 3, kind: output, shape index: {}]
  %s4 = sld [smem:[#allocation0]]
  $region22: #{a_call__.1} parent=0
    _
  %s6 = ssub.s32 1, %s4
  %s7 = scalar_select 0, %s6, %s4
  // Predicated region
  $region2: #{a_call__.1} parent=0 // pred_check
    _
  $region3: #{a_call__.1} parent=0 // pred_check_branch
    %9 = sbr.rel (0) target = $region5
  $region4: #{a_call__.1} parent=0 // pred_region
    _
  $region5: #{a_call__.1} parent=0 // pred_fallthru
    _
  // Predicated region
  $region6: #{a_call__.1} parent=0 // pred_check
    _
  $region7: #{a_call__.1} parent=0 // pred_check_branch
    %11 = sbr.rel (0) target = $region9
  $region8: #{a_call__.1} parent=0 // pred_region
    _
  $region9: #{a_call__.1} parent=0 // pred_fallthru
    _
  // Predicated region
  $region10: #{a_call__.1} parent=0 // pred_check
    _
  $region11: #{a_call__.1} parent=0 // pred_check_branch
    %13 = sbr.rel (0) target = $region13
  $region12: #{a_call__.1} parent=0 // pred_region
    _
  $region13: #{a_call__.1} parent=0 // pred_fallthru
    _
  %v14 = vld [vmem:[%s0] sm:$0xff]
  %v15 = vld [vmem:[%s1] sm:$0xf]
  %v16 = vld [vmem:[%s1 + $0x4] sm:$0xf]
  %v17 = vld [vmem:[%s1 + $0x8] sm:$0xf]
  %v18 = vld [vmem:[%s1 + $0xc] sm:$0xf]
  %v19 = vunpack.c.l.bf16 %v15
  %v20 = vunpack.c.l.bf16 %v16
  %v21 = vunpack.c.l.bf16 %v17
  %v22 = vunpack.c.l.bf16 %v18
  %v23 = vld [vmem:[%s2] sm:$0x1]
  %v25 = vperm.slane %v23, 0
  %vm27 = vcmask 261120
  %v29 = vsel %vm27, %v14, 0
  %31 = vmatpush.msra.mxu0 0.0
  %32 = vmatpush.msra.mxu0 0.0
  %33 = vmatpush.msra.mxu0 0.0
  %34 = vmatpush.msra.mxu0 0.0
  %35 = vmatpush.msra.mxu0 0.0
  %36 = vmatpush.msra.mxu0 0.0
  %37 = vmatpush.msra.mxu0 0.0
  %38 = vmatpush.msra.mxu0 0.0
  %39 = vmatpush.msra.mxu0 0.0
  %40 = vmatpush.msra.mxu0 0.0
  %41 = vmatpush.msra.mxu0 0.0
  %42 = vmatpush.msra.mxu0 0.0
  %43 = vmatpush.msra.mxu0 %v22
  %44 = vmatpush.msra.mxu0 %v21
  %45 = vmatpush.msra.mxu0 %v20
  %46 = vmatpush.msra.mxu0 %v19
  %47 = vmatmul.f32.gmra.mxu0 %v29
  %v48 = vpop.f32.mrf.mxu0
  %v49 = vadd.f32 %v25, %v48
  %50 = vdwg.mxu0
  %51 = vst [vmem:[%s3] sm:$0xff] %v49
  %s52 = scalar_lea.vmem %s0, 8
  %v53 = vld [vmem:[%s52] sm:$0xff]
  %s54 = scalar_lea.vmem %s1, 16
  %v55 = vld [vmem:[%s54] sm:$0xf]
  %v56 = vld [vmem:[%s54 + $0x4] sm:$0xf]
  %v57 = vld [vmem:[%s54 + $0x8] sm:$0xf]
  %v58 = vld [vmem:[%s54 + $0xc] sm:$0xf]
  %v59 = vunpack.c.l.bf16 %v55
  %v60 = vunpack.c.l.bf16 %v56
  %v61 = vunpack.c.l.bf16 %v57
  %v62 = vunpack.c.l.bf16 %v58
  %s63 = scalar_lea.vmem %s2, 1
  %v64 = vld [vmem:[%s63] sm:$0x1]
  %v66 = vperm.slane %v64, 0
  %v69 = vsel %vm27, %v53, 0
  %71 = vmatpush.msra.mxu0 0.0
  %72 = vmatpush.msra.mxu0 0.0
  %73 = vmatpush.msra.mxu0 0.0
  %74 = vmatpush.msra.mxu0 0.0
  %75 = vmatpush.msra.mxu0 0.0
  %76 = vmatpush.msra.mxu0 0.0
  %77 = vmatpush.msra.mxu0 0.0
  %78 = vmatpush.msra.mxu0 0.0
  %79 = vmatpush.msra.mxu0 0.0
  %80 = vmatpush.msra.mxu0 0.0
  %81 = vmatpush.msra.mxu0 0.0
  %82 = vmatpush.msra.mxu0 0.0
  %83 = vmatpush.msra.mxu0 %v62
  %84 = vmatpush.msra.mxu0 %v61
  %85 = vmatpush.msra.mxu0 %v60
  %86 = vmatpush.msra.mxu0 %v59
  %87 = vmatmul.f32.gmra.mxu0 %v69
  %v88 = vpop.f32.mrf.mxu0
  %v89 = vadd.f32 %v66, %v88
  %90 = vdwg.mxu0
  %s91 = scalar_lea.vmem %s3, 8
  %92 = vst [vmem:[%s91] sm:$0xff] %v89
  // Predicated region
  $region14: #{a_call__.1} parent=0 // pred_check
    _
  $region15: #{a_call__.1} parent=0 // pred_check_branch
    %94 = sbr.rel (0) target = $region17
  $region16: #{a_call__.1} parent=0 // pred_region
    _
  $region17: #{a_call__.1} parent=0 // pred_fallthru
    _
  // Predicated region
  $region18: #{a_call__.1} parent=0 // pred_check
    _
  $region19: #{a_call__.1} parent=0 // pred_check_branch
    %96 = sbr.rel (0) target = $region21
  $region20: #{a_call__.1} parent=0 // pred_region
    _
  $region21: #{a_call__.1} parent=0 // pred_fallthru
    _

</llo_original>
